<compile_context>
chip_gen: v7x
topology: tpu7x:2x2x1
jax: 0.10.0
libtpu: 0.0.40
codegen_flags: <defaults>
</compile_context>

<pallas_src>
import jax
import jax.numpy as jnp
from jax import lax
from jax.experimental import pallas as pl
from jax.experimental.pallas import tpu as pltpu  # noqa: F401  (kept for TPU helpers)


def _qrnn_layer(x_bf16, w_ref, b_ref, c0, S, B):
    """One QRNN (fo-pooling) layer on flattened time-major input.

    x_bf16: (S*B, Din) bf16 value; w_ref: (3, Din, H) ref (Z|F|O gates);
    b_ref: (3, 1, H) ref; c0: (B, H) f32 value.
    Returns (list of S hidden chunks each (B, H) f32, final cell (B, H) f32).
    """
    # Gate pre-activations: three clean 2-D MXU matmuls, f32 accumulation.
    z = jnp.tanh(
        jnp.dot(x_bf16, w_ref[0], preferred_element_type=jnp.float32) + b_ref[0])
    f = jax.nn.sigmoid(
        jnp.dot(x_bf16, w_ref[1], preferred_element_type=jnp.float32) + b_ref[1])
    o = jax.nn.sigmoid(
        jnp.dot(x_bf16, w_ref[2], preferred_element_type=jnp.float32) + b_ref[2])
    fz = (1.0 - f) * z  # hoisted off the recurrence critical path

    c = c0
    h_chunks = []
    for t in range(S):  # static unroll: S is small & known at trace time
        lo = t * B
        c = f[lo:lo + B, :] * c + fz[lo:lo + B, :]
        h_chunks.append(o[lo:lo + B, :] * c)
    return h_chunks, c


def encoder_kernel(x_ref, w1_ref, b1_ref, c01_ref, w2_ref, b2_ref, c02_ref,
                   h_ref, c1_ref, c2_ref):
    B, H = c01_ref.shape
    S = x_ref.shape[0] // B

    # ---- layer 1: embedding_size -> hidden_size ----
    h1_chunks, c1 = _qrnn_layer(x_ref[...], w1_ref, b1_ref, c01_ref[...], S, B)
    c1_ref[...] = c1
    h1 = jnp.concatenate(h1_chunks, axis=0).astype(jnp.bfloat16)  # (S*B, H)

    # ---- layer 2: hidden_size -> hidden_size (h1 stays on-chip) ----
    h2_chunks, c2 = _qrnn_layer(h1, w2_ref, b2_ref, c02_ref[...], S, B)
    c2_ref[...] = c2

    # Lane-dense hidden output: row t = [h(t,b=0,:), ..., h(t,b=B-1,:)]
    rows = [jnp.concatenate([ht[b:b + 1, :] for b in range(B)], axis=1)
            for ht in h2_chunks]                  # each (1, B*H)
    h_ref[...] = jnp.concatenate(rows, axis=0)    # (S, B*H): single full store


def make_encoder_params(key, dict_size=60, embedding_size=32, hidden_size=64,
                        n_layers=2):
    assert n_layers == 2, "fused kernel implements the default 2-layer Encoder"
    ks = jax.random.split(key, 2 * n_layers + 1)
    embed = jax.random.normal(ks[0], (dict_size, embedding_size), jnp.float32) * 0.1
    layers = []
    in_dim = embedding_size
    for n in range(n_layers):
        # Gate-major (Z|F|O) weights == Conv1d(kernel_size=1) weight reshaped.
        w = (jax.random.normal(ks[1 + 2 * n], (3, in_dim, hidden_size), jnp.float32)
             / jnp.sqrt(jnp.float32(in_dim)))
        b = jax.random.normal(ks[2 + 2 * n], (3, 1, hidden_size), jnp.float32) * 0.01
        layers.append((w, b))
        in_dim = hidden_size
    return {"embed": embed, "layers": layers, "hidden_size": hidden_size,
            "n_layers": n_layers}


def encoder_forward(params, x_ids, init_c, dropout_p=0.2):
    """Mirrors Encoder.forward: returns (x, c_out_list)."""
    B, S = x_ids.shape
    H = params["hidden_size"]
    E = params["embed"].shape[1]

    # Embedding lookup + time-major flatten (plain-JAX glue).
    # TODO(synk): embedding gather could be fused via scalar prefetch; kept in
    # XLA for simplicity at these shapes.
    emb = jnp.take(params["embed"], x_ids, axis=0)            # (B, S, E)
    x = jnp.transpose(emb, (1, 0, 2)).reshape(S * B, E)       # (S*B, E)
    x = x.astype(jnp.bfloat16)
    # TODO(synk): F.dropout (training mode) is stochastic; applied as identity
    # (eval semantics) since the torch RNG stream cannot be reproduced.

    (w1, b1), (w2, b2) = params["layers"]
    h_flat, c1, c2 = pl.pallas_call(
        encoder_kernel,
        out_shape=(
            jax.ShapeDtypeStruct((S, B * H), jnp.float32),
            jax.ShapeDtypeStruct((B, H), jnp.float32),
            jax.ShapeDtypeStruct((B, H), jnp.float32),
        ),
    )(x, w1.astype(jnp.bfloat16), b1, init_c[0],
      w2.astype(jnp.bfloat16), b2, init_c[1])

    h = h_flat.reshape(S, B, H)   # undo the lane-dense (B*H) fold
    return h, [c1, c2]


# ---------------- pure-JAX reference (f32) for correctness check ----------------
def _qrnn_layer_ref(x, w, b, c0):
    z = jnp.tanh(jnp.einsum("sbe,eh->sbh", x, w[0]) + b[0])
    f = jax.nn.sigmoid(jnp.einsum("sbe,eh->sbh", x, w[1]) + b[1])
    o = jax.nn.sigmoid(jnp.einsum("sbe,eh->sbh", x, w[2]) + b[2])

    def step(c, zfo):
        zt, ft, ot = zfo
        c = ft * c + (1.0 - ft) * zt
        return c, ot * c

    c, h = lax.scan(step, c0, (z, f, o))
    return h, c


def encoder_reference(params, x_ids, init_c):
    emb = jnp.take(params["embed"], x_ids, axis=0)
    x = jnp.transpose(emb, (1, 0, 2))
    cs = []
    for (w, b), c0 in zip(params["layers"], init_c):
        x, c = _qrnn_layer_ref(x, w, b, c0)
        cs.append(c)
    return x, cs


if __name__ == "__main__":
    key = jax.random.PRNGKey(0)
    k_param, k_ids = jax.random.split(key)

    batch, seq = 2, 8
    dict_size, embedding_size, hidden_size, n_layers = 60, 32, 64, 2

    params = make_encoder_params(k_param, dict_size, embedding_size,
                                 hidden_size, n_layers)
    x_ids = jax.random.randint(k_ids, (batch, seq), 0, dict_size, dtype=jnp.int32)

    # init_c mirrors Encoder.init_hidden: rand(B, H) * 0.001 per layer
    # (deterministic synthetic replacement for the torch RNG).
    c_keys = jax.random.split(jax.random.PRNGKey(1), n_layers)
    init_c = [jax.random.uniform(c_keys[n], (batch, hidden_size), jnp.float32) * 0.001
              for n in range(n_layers)]

    out_x, c_out_list = encoder_forward(params, x_ids, init_c)
    jax.block_until_ready(out_x)
    for c in c_out_list:
        jax.block_until_ready(c)

    assert out_x.shape == (seq, batch, hidden_size)
    assert all(c.shape == (batch, hidden_size) for c in c_out_list)
    assert bool(jnp.all(jnp.isfinite(out_x)))

    # Numerical sanity check vs. f32 reference (kernel matmuls run in bf16).
    ref_x, ref_cs = encoder_reference(params, x_ids, init_c)
    assert bool(jnp.allclose(out_x, ref_x, atol=3e-2, rtol=3e-2))
    assert all(bool(jnp.allclose(c, rc, atol=3e-2, rtol=3e-2))
               for c, rc in zip(c_out_list, ref_cs))

    print("KERNEL_OK")
</pallas_src>

<mosaic_0001>
module attributes {stable_mosaic.version = 11 : i64} {
  func.func @encoder_kernel(%arg0: memref<16x32xbf16, #tpu.memory_space<vmem>>, %arg1: memref<3x32x64xbf16, #tpu.memory_space<vmem>>, %arg2: memref<3x1x64xf32, #tpu.memory_space<vmem>>, %arg3: memref<2x64xf32, #tpu.memory_space<vmem>>, %arg4: memref<3x64x64xbf16, #tpu.memory_space<vmem>>, %arg5: memref<3x1x64xf32, #tpu.memory_space<vmem>>, %arg6: memref<2x64xf32, #tpu.memory_space<vmem>>, %arg7: memref<8x128xf32, #tpu.memory_space<vmem>>, %arg8: memref<2x64xf32, #tpu.memory_space<vmem>>, %arg9: memref<2x64xf32, #tpu.memory_space<vmem>>) attributes {dimension_semantics = [], scalar_prefetch = 0 : i64, scratch_operands = 0 : i64, tpu.core_type = #tpu.core_type<tc>} {
    %c0 = arith.constant 0 : index
    %c0_0 = arith.constant 0 : index
    %0 = vector.load %arg0[%c0, %c0_0] : memref<16x32xbf16, #tpu.memory_space<vmem>>, vector<16x32xbf16>
    %c0_1 = arith.constant 0 : index
    %c0_2 = arith.constant 0 : index
    %1 = vector.load %arg3[%c0_1, %c0_2] : memref<2x64xf32, #tpu.memory_space<vmem>>, vector<2x64xf32>
    %c0_3 = arith.constant 0 : index
    %c0_4 = arith.constant 0 : index
    %c0_5 = arith.constant 0 : index
    %2 = vector.load %arg1[%c0_3, %c0_4, %c0_5] : memref<3x32x64xbf16, #tpu.memory_space<vmem>>, vector<1x32x64xbf16>
    %3 = vector.shape_cast %2 : vector<1x32x64xbf16> to vector<32x64xbf16>
    %cst = arith.constant dense<0.000000e+00> : vector<16x64xf32>
    %4 = tpu.matmul %0, %3, %cst {dimension_numbers = #tpu.dot_dimension_numbers<[1], [0], [0], [1], [0, 0, 1, 1], [], []>} : vector<16x32xbf16>, vector<32x64xbf16>, vector<16x64xf32> -> vector<16x64xf32>
    %c0_6 = arith.constant 0 : index
    %c0_7 = arith.constant 0 : index
    %c0_8 = arith.constant 0 : index
    %5 = vector.load %arg2[%c0_6, %c0_7, %c0_8] : memref<3x1x64xf32, #tpu.memory_space<vmem>>, vector<1x1x64xf32>
    %6 = vector.shape_cast %5 : vector<1x1x64xf32> to vector<1x64xf32>
    %7 = vector.broadcast %6 : vector<1x64xf32> to vector<16x64xf32>
    %8 = arith.addf %4, %7 : vector<16x64xf32>
    %9 = math.tanh %8 : vector<16x64xf32>
    %c1 = arith.constant 1 : index
    %c0_9 = arith.constant 0 : index
    %c0_10 = arith.constant 0 : index
    %10 = vector.load %arg1[%c1, %c0_9, %c0_10] : memref<3x32x64xbf16, #tpu.memory_space<vmem>>, vector<1x32x64xbf16>
    %11 = vector.shape_cast %10 : vector<1x32x64xbf16> to vector<32x64xbf16>
    %cst_11 = arith.constant dense<0.000000e+00> : vector<16x64xf32>
    %12 = tpu.matmul %0, %11, %cst_11 {dimension_numbers = #tpu.dot_dimension_numbers<[1], [0], [0], [1], [0, 0, 1, 1], [], []>} : vector<16x32xbf16>, vector<32x64xbf16>, vector<16x64xf32> -> vector<16x64xf32>
    %c1_12 = arith.constant 1 : index
    %c0_13 = arith.constant 0 : index
    %c0_14 = arith.constant 0 : index
    %13 = vector.load %arg2[%c1_12, %c0_13, %c0_14] : memref<3x1x64xf32, #tpu.memory_space<vmem>>, vector<1x1x64xf32>
    %14 = vector.shape_cast %13 : vector<1x1x64xf32> to vector<1x64xf32>
    %15 = vector.broadcast %14 : vector<1x64xf32> to vector<16x64xf32>
    %16 = arith.addf %12, %15 : vector<16x64xf32>
    %17 = arith.negf %16 : vector<16x64xf32>
    %18 = math.exp %17 : vector<16x64xf32>
    %cst_15 = arith.constant 1.000000e+00 : f32
    %19 = vector.broadcast %cst_15 : f32 to vector<16x64xf32>
    %20 = arith.addf %19, %18 : vector<16x64xf32>
    %21 = arith.divf %19, %20 : vector<16x64xf32>
    %c2 = arith.constant 2 : index
    %c0_16 = arith.constant 0 : index
    %c0_17 = arith.constant 0 : index
    %22 = vector.load %arg1[%c2, %c0_16, %c0_17] : memref<3x32x64xbf16, #tpu.memory_space<vmem>>, vector<1x32x64xbf16>
    %23 = vector.shape_cast %22 : vector<1x32x64xbf16> to vector<32x64xbf16>
    %cst_18 = arith.constant dense<0.000000e+00> : vector<16x64xf32>
    %24 = tpu.matmul %0, %23, %cst_18 {dimension_numbers = #tpu.dot_dimension_numbers<[1], [0], [0], [1], [0, 0, 1, 1], [], []>} : vector<16x32xbf16>, vector<32x64xbf16>, vector<16x64xf32> -> vector<16x64xf32>
    %c2_19 = arith.constant 2 : index
    %c0_20 = arith.constant 0 : index
    %c0_21 = arith.constant 0 : index
    %25 = vector.load %arg2[%c2_19, %c0_20, %c0_21] : memref<3x1x64xf32, #tpu.memory_space<vmem>>, vector<1x1x64xf32>
    %26 = vector.shape_cast %25 : vector<1x1x64xf32> to vector<1x64xf32>
    %27 = vector.broadcast %26 : vector<1x64xf32> to vector<16x64xf32>
    %28 = arith.addf %24, %27 : vector<16x64xf32>
    %29 = arith.negf %28 : vector<16x64xf32>
    %30 = math.exp %29 : vector<16x64xf32>
    %cst_22 = arith.constant 1.000000e+00 : f32
    %31 = vector.broadcast %cst_22 : f32 to vector<16x64xf32>
    %32 = arith.addf %31, %30 : vector<16x64xf32>
    %33 = arith.divf %31, %32 : vector<16x64xf32>
    %cst_23 = arith.constant 1.000000e+00 : f32
    %34 = vector.broadcast %cst_23 : f32 to vector<16x64xf32>
    %35 = arith.subf %34, %21 : vector<16x64xf32>
    %36 = arith.mulf %35, %9 : vector<16x64xf32>
    %37 = vector.extract_strided_slice %21 {offsets = [0, 0], sizes = [2, 64], strides = [1, 1]} : vector<16x64xf32> to vector<2x64xf32>
    %38 = arith.mulf %37, %1 : vector<2x64xf32>
    %39 = vector.extract_strided_slice %36 {offsets = [0, 0], sizes = [2, 64], strides = [1, 1]} : vector<16x64xf32> to vector<2x64xf32>
    %40 = arith.addf %38, %39 : vector<2x64xf32>
    %41 = vector.extract_strided_slice %33 {offsets = [0, 0], sizes = [2, 64], strides = [1, 1]} : vector<16x64xf32> to vector<2x64xf32>
    %42 = arith.mulf %41, %40 : vector<2x64xf32>
    %43 = vector.extract_strided_slice %21 {offsets = [2, 0], sizes = [2, 64], strides = [1, 1]} : vector<16x64xf32> to vector<2x64xf32>
    %44 = arith.mulf %43, %40 : vector<2x64xf32>
    %45 = vector.extract_strided_slice %36 {offsets = [2, 0], sizes = [2, 64], strides = [1, 1]} : vector<16x64xf32> to vector<2x64xf32>
    %46 = arith.addf %44, %45 : vector<2x64xf32>
    %47 = vector.extract_strided_slice %33 {offsets = [2, 0], sizes = [2, 64], strides = [1, 1]} : vector<16x64xf32> to vector<2x64xf32>
    %48 = arith.mulf %47, %46 : vector<2x64xf32>
    %49 = vector.extract_strided_slice %21 {offsets = [4, 0], sizes = [2, 64], strides = [1, 1]} : vector<16x64xf32> to vector<2x64xf32>
    %50 = arith.mulf %49, %46 : vector<2x64xf32>
    %51 = vector.extract_strided_slice %36 {offsets = [4, 0], sizes = [2, 64], strides = [1, 1]} : vector<16x64xf32> to vector<2x64xf32>
    %52 = arith.addf %50, %51 : vector<2x64xf32>
    %53 = vector.extract_strided_slice %33 {offsets = [4, 0], sizes = [2, 64], strides = [1, 1]} : vector<16x64xf32> to vector<2x64xf32>
    %54 = arith.mulf %53, %52 : vector<2x64xf32>
    %55 = vector.extract_strided_slice %21 {offsets = [6, 0], sizes = [2, 64], strides = [1, 1]} : vector<16x64xf32> to vector<2x64xf32>
    %56 = arith.mulf %55, %52 : vector<2x64xf32>
    %57 = vector.extract_strided_slice %36 {offsets = [6, 0], sizes = [2, 64], strides = [1, 1]} : vector<16x64xf32> to vector<2x64xf32>
    %58 = arith.addf %56, %57 : vector<2x64xf32>
    %59 = vector.extract_strided_slice %33 {offsets = [6, 0], sizes = [2, 64], strides = [1, 1]} : vector<16x64xf32> to vector<2x64xf32>
    %60 = arith.mulf %59, %58 : vector<2x64xf32>
    %61 = vector.extract_strided_slice %21 {offsets = [8, 0], sizes = [2, 64], strides = [1, 1]} : vector<16x64xf32> to vector<2x64xf32>
    %62 = arith.mulf %61, %58 : vector<2x64xf32>
    %63 = vector.extract_strided_slice %36 {offsets = [8, 0], sizes = [2, 64], strides = [1, 1]} : vector<16x64xf32> to vector<2x64xf32>
    %64 = arith.addf %62, %63 : vector<2x64xf32>
    %65 = vector.extract_strided_slice %33 {offsets = [8, 0], sizes = [2, 64], strides = [1, 1]} : vector<16x64xf32> to vector<2x64xf32>
    %66 = arith.mulf %65, %64 : vector<2x64xf32>
    %67 = vector.extract_strided_slice %21 {offsets = [10, 0], sizes = [2, 64], strides = [1, 1]} : vector<16x64xf32> to vector<2x64xf32>
    %68 = arith.mulf %67, %64 : vector<2x64xf32>
    %69 = vector.extract_strided_slice %36 {offsets = [10, 0], sizes = [2, 64], strides = [1, 1]} : vector<16x64xf32> to vector<2x64xf32>
    %70 = arith.addf %68, %69 : vector<2x64xf32>
    %71 = vector.extract_strided_slice %33 {offsets = [10, 0], sizes = [2, 64], strides = [1, 1]} : vector<16x64xf32> to vector<2x64xf32>
    %72 = arith.mulf %71, %70 : vector<2x64xf32>
    %73 = vector.extract_strided_slice %21 {offsets = [12, 0], sizes = [2, 64], strides = [1, 1]} : vector<16x64xf32> to vector<2x64xf32>
    %74 = arith.mulf %73, %70 : vector<2x64xf32>
    %75 = vector.extract_strided_slice %36 {offsets = [12, 0], sizes = [2, 64], strides = [1, 1]} : vector<16x64xf32> to vector<2x64xf32>
    %76 = arith.addf %74, %75 : vector<2x64xf32>
    %77 = vector.extract_strided_slice %33 {offsets = [12, 0], sizes = [2, 64], strides = [1, 1]} : vector<16x64xf32> to vector<2x64xf32>
    %78 = arith.mulf %77, %76 : vector<2x64xf32>
    %79 = vector.extract_strided_slice %21 {offsets = [14, 0], sizes = [2, 64], strides = [1, 1]} : vector<16x64xf32> to vector<2x64xf32>
    %80 = arith.mulf %79, %76 : vector<2x64xf32>
    %81 = vector.extract_strided_slice %36 {offsets = [14, 0], sizes = [2, 64], strides = [1, 1]} : vector<16x64xf32> to vector<2x64xf32>
    %82 = arith.addf %80, %81 : vector<2x64xf32>
    %83 = vector.extract_strided_slice %33 {offsets = [14, 0], sizes = [2, 64], strides = [1, 1]} : vector<16x64xf32> to vector<2x64xf32>
    %84 = arith.mulf %83, %82 : vector<2x64xf32>
    %c0_24 = arith.constant 0 : index
    %c0_25 = arith.constant 0 : index
    %85 = vector.load %arg8[%c0_24, %c0_25] : memref<2x64xf32, #tpu.memory_space<vmem>>, vector<2x64xf32>
    tpu.vector_store %arg8[%c0_24, %c0_25], %82 {strides = array<i32>} : memref<2x64xf32, #tpu.memory_space<vmem>>, vector<2x64xf32>,
    %86 = tpu.concatenate %42, %48, %54, %60, %66, %72, %78, %84 in 0 : vector<2x64xf32>, vector<2x64xf32>, vector<2x64xf32>, vector<2x64xf32>, vector<2x64xf32>, vector<2x64xf32>, vector<2x64xf32>, vector<2x64xf32> -> vector<16x64xf32>
    %87 = arith.truncf %86 : vector<16x64xf32> to vector<16x64xbf16>
    %c0_26 = arith.constant 0 : index
    %c0_27 = arith.constant 0 : index
    %88 = vector.load %arg6[%c0_26, %c0_27] : memref<2x64xf32, #tpu.memory_space<vmem>>, vector<2x64xf32>
    %c0_28 = arith.constant 0 : index
    %c0_29 = arith.constant 0 : index
    %c0_30 = arith.constant 0 : index
    %89 = vector.load %arg4[%c0_28, %c0_29, %c0_30] : memref<3x64x64xbf16, #tpu.memory_space<vmem>>, vector<1x64x64xbf16>
    %90 = vector.shape_cast %89 : vector<1x64x64xbf16> to vector<64x64xbf16>
    %cst_31 = arith.constant dense<0.000000e+00> : vector<16x64xf32>
    %91 = tpu.matmul %87, %90, %cst_31 {dimension_numbers = #tpu.dot_dimension_numbers<[1], [0], [0], [1], [0, 0, 1, 1], [], []>} : vector<16x64xbf16>, vector<64x64xbf16>, vector<16x64xf32> -> vector<16x64xf32>
    %c0_32 = arith.constant 0 : index
    %c0_33 = arith.constant 0 : index
    %c0_34 = arith.constant 0 : index
    %92 = vector.load %arg5[%c0_32, %c0_33, %c0_34] : memref<3x1x64xf32, #tpu.memory_space<vmem>>, vector<1x1x64xf32>
    %93 = vector.shape_cast %92 : vector<1x1x64xf32> to vector<1x64xf32>
    %94 = vector.broadcast %93 : vector<1x64xf32> to vector<16x64xf32>
    %95 = arith.addf %91, %94 : vector<16x64xf32>
    %96 = math.tanh %95 : vector<16x64xf32>
    %c1_35 = arith.constant 1 : index
    %c0_36 = arith.constant 0 : index
    %c0_37 = arith.constant 0 : index
    %97 = vector.load %arg4[%c1_35, %c0_36, %c0_37] : memref<3x64x64xbf16, #tpu.memory_space<vmem>>, vector<1x64x64xbf16>
    %98 = vector.shape_cast %97 : vector<1x64x64xbf16> to vector<64x64xbf16>
    %cst_38 = arith.constant dense<0.000000e+00> : vector<16x64xf32>
    %99 = tpu.matmul %87, %98, %cst_38 {dimension_numbers = #tpu.dot_dimension_numbers<[1], [0], [0], [1], [0, 0, 1, 1], [], []>} : vector<16x64xbf16>, vector<64x64xbf16>, vector<16x64xf32> -> vector<16x64xf32>
    %c1_39 = arith.constant 1 : index
    %c0_40 = arith.constant 0 : index
    %c0_41 = arith.constant 0 : index
    %100 = vector.load %arg5[%c1_39, %c0_40, %c0_41] : memref<3x1x64xf32, #tpu.memory_space<vmem>>, vector<1x1x64xf32>
    %101 = vector.shape_cast %100 : vector<1x1x64xf32> to vector<1x64xf32>
    %102 = vector.broadcast %101 : vector<1x64xf32> to vector<16x64xf32>
    %103 = arith.addf %99, %102 : vector<16x64xf32>
    %104 = arith.negf %103 : vector<16x64xf32>
    %105 = math.exp %104 : vector<16x64xf32>
    %cst_42 = arith.constant 1.000000e+00 : f32
    %106 = vector.broadcast %cst_42 : f32 to vector<16x64xf32>
    %107 = arith.addf %106, %105 : vector<16x64xf32>
    %108 = arith.divf %106, %107 : vector<16x64xf32>
    %c2_43 = arith.constant 2 : index
    %c0_44 = arith.constant 0 : index
    %c0_45 = arith.constant 0 : index
    %109 = vector.load %arg4[%c2_43, %c0_44, %c0_45] : memref<3x64x64xbf16, #tpu.memory_space<vmem>>, vector<1x64x64xbf16>
    %110 = vector.shape_cast %109 : vector<1x64x64xbf16> to vector<64x64xbf16>
    %cst_46 = arith.constant dense<0.000000e+00> : vector<16x64xf32>
    %111 = tpu.matmul %87, %110, %cst_46 {dimension_numbers = #tpu.dot_dimension_numbers<[1], [0], [0], [1], [0, 0, 1, 1], [], []>} : vector<16x64xbf16>, vector<64x64xbf16>, vector<16x64xf32> -> vector<16x64xf32>
    %c2_47 = arith.constant 2 : index
    %c0_48 = arith.constant 0 : index
    %c0_49 = arith.constant 0 : index
    %112 = vector.load %arg5[%c2_47, %c0_48, %c0_49] : memref<3x1x64xf32, #tpu.memory_space<vmem>>, vector<1x1x64xf32>
    %113 = vector.shape_cast %112 : vector<1x1x64xf32> to vector<1x64xf32>
    %114 = vector.broadcast %113 : vector<1x64xf32> to vector<16x64xf32>
    %115 = arith.addf %111, %114 : vector<16x64xf32>
    %116 = arith.negf %115 : vector<16x64xf32>
    %117 = math.exp %116 : vector<16x64xf32>
    %cst_50 = arith.constant 1.000000e+00 : f32
    %118 = vector.broadcast %cst_50 : f32 to vector<16x64xf32>
    %119 = arith.addf %118, %117 : vector<16x64xf32>
    %120 = arith.divf %118, %119 : vector<16x64xf32>
    %cst_51 = arith.constant 1.000000e+00 : f32
    %121 = vector.broadcast %cst_51 : f32 to vector<16x64xf32>
    %122 = arith.subf %121, %108 : vector<16x64xf32>
    %123 = arith.mulf %122, %96 : vector<16x64xf32>
    %124 = vector.extract_strided_slice %108 {offsets = [0, 0], sizes = [2, 64], strides = [1, 1]} : vector<16x64xf32> to vector<2x64xf32>
    %125 = arith.mulf %124, %88 : vector<2x64xf32>
    %126 = vector.extract_strided_slice %123 {offsets = [0, 0], sizes = [2, 64], strides = [1, 1]} : vector<16x64xf32> to vector<2x64xf32>
    %127 = arith.addf %125, %126 : vector<2x64xf32>
    %128 = vector.extract_strided_slice %120 {offsets = [0, 0], sizes = [2, 64], strides = [1, 1]} : vector<16x64xf32> to vector<2x64xf32>
    %129 = arith.mulf %128, %127 : vector<2x64xf32>
    %130 = vector.extract_strided_slice %108 {offsets = [2, 0], sizes = [2, 64], strides = [1, 1]} : vector<16x64xf32> to vector<2x64xf32>
    %131 = arith.mulf %130, %127 : vector<2x64xf32>
    %132 = vector.extract_strided_slice %123 {offsets = [2, 0], sizes = [2, 64], strides = [1, 1]} : vector<16x64xf32> to vector<2x64xf32>
    %133 = arith.addf %131, %132 : vector<2x64xf32>
    %134 = vector.extract_strided_slice %120 {offsets = [2, 0], sizes = [2, 64], strides = [1, 1]} : vector<16x64xf32> to vector<2x64xf32>
    %135 = arith.mulf %134, %133 : vector<2x64xf32>
    %136 = vector.extract_strided_slice %108 {offsets = [4, 0], sizes = [2, 64], strides = [1, 1]} : vector<16x64xf32> to vector<2x64xf32>
    %137 = arith.mulf %136, %133 : vector<2x64xf32>
    %138 = vector.extract_strided_slice %123 {offsets = [4, 0], sizes = [2, 64], strides = [1, 1]} : vector<16x64xf32> to vector<2x64xf32>
    %139 = arith.addf %137, %138 : vector<2x64xf32>
    %140 = vector.extract_strided_slice %120 {offsets = [4, 0], sizes = [2, 64], strides = [1, 1]} : vector<16x64xf32> to vector<2x64xf32>
    %141 = arith.mulf %140, %139 : vector<2x64xf32>
    %142 = vector.extract_strided_slice %108 {offsets = [6, 0], sizes = [2, 64], strides = [1, 1]} : vector<16x64xf32> to vector<2x64xf32>
    %143 = arith.mulf %142, %139 : vector<2x64xf32>
    %144 = vector.extract_strided_slice %123 {offsets = [6, 0], sizes = [2, 64], strides = [1, 1]} : vector<16x64xf32> to vector<2x64xf32>
    %145 = arith.addf %143, %144 : vector<2x64xf32>
    %146 = vector.extract_strided_slice %120 {offsets = [6, 0], sizes = [2, 64], strides = [1, 1]} : vector<16x64xf32> to vector<2x64xf32>
    %147 = arith.mulf %146, %145 : vector<2x64xf32>
    %148 = vector.extract_strided_slice %108 {offsets = [8, 0], sizes = [2, 64], strides = [1, 1]} : vector<16x64xf32> to vector<2x64xf32>
    %149 = arith.mulf %148, %145 : vector<2x64xf32>
    %150 = vector.extract_strided_slice %123 {offsets = [8, 0], sizes = [2, 64], strides = [1, 1]} : vector<16x64xf32> to vector<2x64xf32>
    %151 = arith.addf %149, %150 : vector<2x64xf32>
    %152 = vector.extract_strided_slice %120 {offsets = [8, 0], sizes = [2, 64], strides = [1, 1]} : vector<16x64xf32> to vector<2x64xf32>
    %153 = arith.mulf %152, %151 : vector<2x64xf32>
    %154 = vector.extract_strided_slice %108 {offsets = [10, 0], sizes = [2, 64], strides = [1, 1]} : vector<16x64xf32> to vector<2x64xf32>
    %155 = arith.mulf %154, %151 : vector<2x64xf32>
    %156 = vector.extract_strided_slice %123 {offsets = [10, 0], sizes = [2, 64], strides = [1, 1]} : vector<16x64xf32> to vector<2x64xf32>
    %157 = arith.addf %155, %156 : vector<2x64xf32>
    %158 = vector.extract_strided_slice %120 {offsets = [10, 0], sizes = [2, 64], strides = [1, 1]} : vector<16x64xf32> to vector<2x64xf32>
    %159 = arith.mulf %158, %157 : vector<2x64xf32>
    %160 = vector.extract_strided_slice %108 {offsets = [12, 0], sizes = [2, 64], strides = [1, 1]} : vector<16x64xf32> to vector<2x64xf32>
    %161 = arith.mulf %160, %157 : vector<2x64xf32>
    %162 = vector.extract_strided_slice %123 {offsets = [12, 0], sizes = [2, 64], strides = [1, 1]} : vector<16x64xf32> to vector<2x64xf32>
    %163 = arith.addf %161, %162 : vector<2x64xf32>
    %164 = vector.extract_strided_slice %120 {offsets = [12, 0], sizes = [2, 64], strides = [1, 1]} : vector<16x64xf32> to vector<2x64xf32>
    %165 = arith.mulf %164, %163 : vector<2x64xf32>
    %166 = vector.extract_strided_slice %108 {offsets = [14, 0], sizes = [2, 64], strides = [1, 1]} : vector<16x64xf32> to vector<2x64xf32>
    %167 = arith.mulf %166, %163 : vector<2x64xf32>
    %168 = vector.extract_strided_slice %123 {offsets = [14, 0], sizes = [2, 64], strides = [1, 1]} : vector<16x64xf32> to vector<2x64xf32>
    %169 = arith.addf %167, %168 : vector<2x64xf32>
    %170 = vector.extract_strided_slice %120 {offsets = [14, 0], sizes = [2, 64], strides = [1, 1]} : vector<16x64xf32> to vector<2x64xf32>
    %171 = arith.mulf %170, %169 : vector<2x64xf32>
    %c0_52 = arith.constant 0 : index
    %c0_53 = arith.constant 0 : index
    %172 = vector.load %arg9[%c0_52, %c0_53] : memref<2x64xf32, #tpu.memory_space<vmem>>, vector<2x64xf32>
    tpu.vector_store %arg9[%c0_52, %c0_53], %169 {strides = array<i32>} : memref<2x64xf32, #tpu.memory_space<vmem>>, vector<2x64xf32>,
    %173 = vector.extract_strided_slice %129 {offsets = [0, 0], sizes = [1, 64], strides = [1, 1]} : vector<2x64xf32> to vector<1x64xf32>
    %174 = vector.extract_strided_slice %129 {offsets = [1, 0], sizes = [1, 64], strides = [1, 1]} : vector<2x64xf32> to vector<1x64xf32>
    %175 = tpu.concatenate %173, %174 in 1 : vector<1x64xf32>, vector<1x64xf32> -> vector<1x128xf32>
    %176 = vector.extract_strided_slice %135 {offsets = [0, 0], sizes = [1, 64], strides = [1, 1]} : vector<2x64xf32> to vector<1x64xf32>
    %177 = vector.extract_strided_slice %135 {offsets = [1, 0], sizes = [1, 64], strides = [1, 1]} : vector<2x64xf32> to vector<1x64xf32>
    %178 = tpu.concatenate %176, %177 in 1 : vector<1x64xf32>, vector<1x64xf32> -> vector<1x128xf32>
    %179 = vector.extract_strided_slice %141 {offsets = [0, 0], sizes = [1, 64], strides = [1, 1]} : vector<2x64xf32> to vector<1x64xf32>
    %180 = vector.extract_strided_slice %141 {offsets = [1, 0], sizes = [1, 64], strides = [1, 1]} : vector<2x64xf32> to vector<1x64xf32>
    %181 = tpu.concatenate %179, %180 in 1 : vector<1x64xf32>, vector<1x64xf32> -> vector<1x128xf32>
    %182 = vector.extract_strided_slice %147 {offsets = [0, 0], sizes = [1, 64], strides = [1, 1]} : vector<2x64xf32> to vector<1x64xf32>
    %183 = vector.extract_strided_slice %147 {offsets = [1, 0], sizes = [1, 64], strides = [1, 1]} : vector<2x64xf32> to vector<1x64xf32>
    %184 = tpu.concatenate %182, %183 in 1 : vector<1x64xf32>, vector<1x64xf32> -> vector<1x128xf32>
    %185 = vector.extract_strided_slice %153 {offsets = [0, 0], sizes = [1, 64], strides = [1, 1]} : vector<2x64xf32> to vector<1x64xf32>
    %186 = vector.extract_strided_slice %153 {offsets = [1, 0], sizes = [1, 64], strides = [1, 1]} : vector<2x64xf32> to vector<1x64xf32>
    %187 = tpu.concatenate %185, %186 in 1 : vector<1x64xf32>, vector<1x64xf32> -> vector<1x128xf32>
    %188 = vector.extract_strided_slice %159 {offsets = [0, 0], sizes = [1, 64], strides = [1, 1]} : vector<2x64xf32> to vector<1x64xf32>
    %189 = vector.extract_strided_slice %159 {offsets = [1, 0], sizes = [1, 64], strides = [1, 1]} : vector<2x64xf32> to vector<1x64xf32>
    %190 = tpu.concatenate %188, %189 in 1 : vector<1x64xf32>, vector<1x64xf32> -> vector<1x128xf32>
    %191 = vector.extract_strided_slice %165 {offsets = [0, 0], sizes = [1, 64], strides = [1, 1]} : vector<2x64xf32> to vector<1x64xf32>
    %192 = vector.extract_strided_slice %165 {offsets = [1, 0], sizes = [1, 64], strides = [1, 1]} : vector<2x64xf32> to vector<1x64xf32>
    %193 = tpu.concatenate %191, %192 in 1 : vector<1x64xf32>, vector<1x64xf32> -> vector<1x128xf32>
    %194 = vector.extract_strided_slice %171 {offsets = [0, 0], sizes = [1, 64], strides = [1, 1]} : vector<2x64xf32> to vector<1x64xf32>
    %195 = vector.extract_strided_slice %171 {offsets = [1, 0], sizes = [1, 64], strides = [1, 1]} : vector<2x64xf32> to vector<1x64xf32>
    %196 = tpu.concatenate %194, %195 in 1 : vector<1x64xf32>, vector<1x64xf32> -> vector<1x128xf32>
    %197 = tpu.concatenate %175, %178, %181, %184, %187, %190, %193, %196 in 0 : vector<1x128xf32>, vector<1x128xf32>, vector<1x128xf32>, vector<1x128xf32>, vector<1x128xf32>, vector<1x128xf32>, vector<1x128xf32>, vector<1x128xf32> -> vector<8x128xf32>
    %c0_54 = arith.constant 0 : index
    %c0_55 = arith.constant 0 : index
    %198 = vector.load %arg7[%c0_54, %c0_55] : memref<8x128xf32, #tpu.memory_space<vmem>>, vector<8x128xf32>
    tpu.vector_store %arg7[%c0_54, %c0_55], %197 {strides = array<i32>} : memref<8x128xf32, #tpu.memory_space<vmem>>, vector<8x128xf32>,
    return
  }
}

</mosaic_0001>

<llo_original>
// kernel: tpu_custom_call.1
$region0: #{tpu_custom_call.1}
  #allocation0 [shape = 'u32[]', space=smem, size = 0x4, offset = 0x4, fixed_abs, tag = 'smem constant byte address 0x4 - core index']
  #allocation1 [shape = 'u32[144,128]{1,0:T(1,128)}', space=vmem, size = 0x12000, scoped, tag = 'internal scratch']
  %s0 = inlined_call_operand.hbm [shape: bf16[16,32], index: 0, kind: input, shape index: {}]
  %s1 = inlined_call_operand.hbm [shape: bf16[3,32,64], index: 1, kind: input, shape index: {}]
  %s2 = inlined_call_operand.vmem [shape: f32[3,1,64], index: 2, kind: input, shape index: {}]
  %s3 = inlined_call_operand.vmem [shape: f32[2,64], index: 3, kind: input, shape index: {}]
  %s4 = inlined_call_operand.hbm [shape: bf16[3,64,64], index: 4, kind: input, shape index: {}]
  %s5 = inlined_call_operand.vmem [shape: f32[3,1,64], index: 5, kind: input, shape index: {}]
  %s6 = inlined_call_operand.vmem [shape: f32[2,64], index: 6, kind: input, shape index: {}]
  %s7 = inlined_call_operand.hbm [shape: f32[8,128], index: 7, kind: output, shape index: {0}]
  %s8 = inlined_call_operand.hbm [shape: f32[2,64], index: 8, kind: output, shape index: {1}]
  %s9 = inlined_call_operand.hbm [shape: f32[2,64], index: 9, kind: output, shape index: {2}]
  %10 = xla_tuple %s7, %s8, %s9
  %s11 = sld [smem:[#allocation0]]
  $region66: #{tpu_custom_call.1} parent=0
    _
  %s13 = ssub.s32 1, %s11
  %s14 = scalar_select 0, %s13, %s11
  $region1: #{tpu_custom_call.1} parent=0
    #allocation2 [shape = 'u8[4096]{0}', space=vmem, size = 0x1000, scoped, tag = 'input window, operand 0, single buffered']
    #allocation3 [shape = 's32[1]{0}', space=sflag, size = 0x4, scoped, tag = 'scoped memory for tpu_custom_call.1']
    #allocation4 [shape = 's32[1]{0}', space=sflag, size = 0x4, scoped, tag = 'scoped memory for tpu_custom_call.1']
    #allocation5 [shape = 'u8[24576]{0}', space=vmem, size = 0x6000, scoped, tag = 'input window, operand 1, single buffered']
    #allocation6 [shape = 's32[1]{0}', space=sflag, size = 0x4, scoped, tag = 'scoped memory for tpu_custom_call.1']
    #allocation7 [shape = 'u8[49152]{0}', space=vmem, size = 0xc000, scoped, tag = 'input window, operand 4, single buffered']
    #allocation8 [shape = 'u8[4096]{0}', space=vmem, size = 0x1000, scoped, tag = 'output window, operand 0, single buffered']
    #allocation9 [shape = 'u8[1024]{0}', space=vmem, size = 0x400, scoped, tag = 'output window, operand 1, single buffered']
    #allocation10 [shape = 's32[1]{0}', space=sflag, size = 0x4, scoped, tag = 'scoped memory for tpu_custom_call.1']
    #allocation11 [shape = 'u8[1024]{0}', space=vmem, size = 0x400, scoped, tag = 'output window, operand 2, single buffered']
    %15 = vsyncpa [#allocation3], 0
    %16 = vsyncpa [#allocation6], 0
    %17 = vsyncpa [#allocation4], 0
    %18 = vsyncpa [#allocation10], 0
    // Predicated region
    $region2: #{tpu_custom_call.1} parent=1 // pred_check
      _
    $region3: #{tpu_custom_call.1} parent=1 // pred_check_branch
      %20 = sbr.rel (0) target = $region5
    $region4: #{tpu_custom_call.1} parent=1 // pred_region
      %s22 = ssub.s32 128, 128
      %23 = vsyncadd [#allocation3], %s22
      %s24 = sshll.u32 [#allocation2], 4
      %s25 = int_to_ptr.vmem [resolvable:$true] %s24
      %30 = dma.hbm_to_vmem [thread:$0]  %s0, 128, %s25, [#allocation3], 64, 64, 4
    $region5: #{tpu_custom_call.1} parent=1 // pred_fallthru
      _
    // Predicated region
    $region6: #{tpu_custom_call.1} parent=1 // pred_check
      _
    $region7: #{tpu_custom_call.1} parent=1 // pred_check_branch
      %32 = sbr.rel (0) target = $region9
    $region8: #{tpu_custom_call.1} parent=1 // pred_region
      %s34 = ssub.s32 768, 768
      %35 = vsyncadd [#allocation6], %s34
      %s36 = sshll.u32 [#allocation5], 4
      %s37 = int_to_ptr.vmem [resolvable:$true] %s36
      %42 = dma.hbm_to_vmem [thread:$0]  %s1, 768, %s37, [#allocation6], 64, 64, 4
    $region9: #{tpu_custom_call.1} parent=1 // pred_fallthru
      _
    // Predicated region
    $region10: #{tpu_custom_call.1} parent=1 // pred_check
      _
    $region11: #{tpu_custom_call.1} parent=1 // pred_check_branch
      %44 = sbr.rel (0) target = $region13
    $region12: #{tpu_custom_call.1} parent=1 // pred_region
      _
    $region13: #{tpu_custom_call.1} parent=1 // pred_fallthru
      _
    // Predicated region
    $region14: #{tpu_custom_call.1} parent=1 // pred_check
      _
    $region15: #{tpu_custom_call.1} parent=1 // pred_check_branch
      %46 = sbr.rel (0) target = $region17
    $region16: #{tpu_custom_call.1} parent=1 // pred_region
      _
    $region17: #{tpu_custom_call.1} parent=1 // pred_fallthru
      _
    // Predicated region
    $region18: #{tpu_custom_call.1} parent=1 // pred_check
      _
    $region19: #{tpu_custom_call.1} parent=1 // pred_check_branch
      %48 = sbr.rel (0) target = $region21
    $region20: #{tpu_custom_call.1} parent=1 // pred_region
      %s50 = ssub.s32 1536, 1536
      %51 = vsyncadd [#allocation6], %s50
      %s52 = sshll.u32 [#allocation7], 4
      %s53 = int_to_ptr.vmem [resolvable:$true] %s52
      %58 = dma.hbm_to_vmem [thread:$0]  %s4, 1536, %s53, [#allocation6], 64, 64, 4
    $region21: #{tpu_custom_call.1} parent=1 // pred_fallthru
      _
    // Predicated region
    $region22: #{tpu_custom_call.1} parent=1 // pred_check
      _
    $region23: #{tpu_custom_call.1} parent=1 // pred_check_branch
      %60 = sbr.rel (0) target = $region25
    $region24: #{tpu_custom_call.1} parent=1 // pred_region
      _
    $region25: #{tpu_custom_call.1} parent=1 // pred_fallthru
      _
    // Predicated region
    $region26: #{tpu_custom_call.1} parent=1 // pred_check
      _
    $region27: #{tpu_custom_call.1} parent=1 // pred_check_branch
      %62 = sbr.rel (0) target = $region29
    $region28: #{tpu_custom_call.1} parent=1 // pred_region
      _
    $region29: #{tpu_custom_call.1} parent=1 // pred_fallthru
      _
    // Predicated region
    $region30: #{tpu_custom_call.1} parent=1 // pred_check
      _
    $region31: #{tpu_custom_call.1} parent=1 // pred_check_branch
      %64 = sbr.rel (0) target = $region33
    $region32: #{tpu_custom_call.1} parent=1 // pred_region
      %65 = dma.done [#allocation3], 128
    $region33: #{tpu_custom_call.1} parent=1 // pred_fallthru
      _
    // Predicated region
    $region34: #{tpu_custom_call.1} parent=1 // pred_check
      _
    $region35: #{tpu_custom_call.1} parent=1 // pred_check_branch
      %67 = sbr.rel (0) target = $region37
    $region36: #{tpu_custom_call.1} parent=1 // pred_region
      %68 = dma.done [#allocation6], 768
    $region37: #{tpu_custom_call.1} parent=1 // pred_fallthru
      _
    // Predicated region
    $region38: #{tpu_custom_call.1} parent=1 // pred_check
      _
    $region39: #{tpu_custom_call.1} parent=1 // pred_check_branch
      %70 = sbr.rel (0) target = $region41
    $region40: #{tpu_custom_call.1} parent=1 // pred_region
      %71 = dma.done [#allocation6], 1536
    $region41: #{tpu_custom_call.1} parent=1 // pred_fallthru
      _
    %v73 = vld [vmem:[#allocation2] sm:$0xf]
    %v74 = vld [vmem:[#allocation2 + $0x4] sm:$0xf]
    %v75 = vld [vmem:[%s3] sm:$0x3]
    %v76 = vld [vmem:[#allocation5] sm:$0xf]
    %v77 = vld [vmem:[#allocation5 + $0x4] sm:$0xf]
    %v78 = vld [vmem:[#allocation5 + $0x8] sm:$0xf]
    %v79 = vld [vmem:[#allocation5 + $0xc] sm:$0xf]
    %v80 = vld [vmem:[%s2] sm:$0x1]
    %v82 = vlaneseq
    %v83 = vshrl.u32 %v82, 7
    %v84 = vsub.s32 0, %v83
    %v85 = vrot.slane %v80, %v84
    %v89 = vunpack.c.l.b16 %v73
    %v90 = vunpack.c.l.b16 %v74
    %v91 = vpack.c.b16 %v90, %v89
    %v96 = vunpack.c.l.b16 %v76
    %v97 = vunpack.c.l.b16 %v77
    %v98 = vunpack.c.l.b16 %v78
    %v99 = vunpack.c.l.b16 %v79
    %v100 = vpack.c.b16 %v97, %v96
    %v101 = vpack.c.b16 %v99, %v98
    %vm104 = vcmask 261120
    %v106 = vsel %vm104, %v91, 0
    %108 = vmatprep.subr.bf16.mxu0 0
    %109 = vmatpush1.bf16.msra.mxu0 %v100
    %110 = vmatprep.subr.bf16.mxu0 0
    %111 = vmatpush1.bf16.msra.mxu0 %v101
    %112 = vmatprep.subr.bf16.mxu0 0
    %113 = vmatpush1.bf16.msra.mxu0 0
    %114 = vmatprep.subr.bf16.mxu0 0
    %115 = vmatpush1.bf16.msra.mxu0 0
    %116 = vmatprep.subr.bf16.mxu0 0
    %117 = vmatpush1.bf16.msra.mxu0 0
    %118 = vmatprep.subr.bf16.mxu0 0
    %119 = vmatpush1.bf16.msra.mxu0 0
    %120 = vmatprep.subr.bf16.mxu0 0
    %121 = vmatpush1.bf16.msra.mxu0 0
    %122 = vmatprep.subr.bf16.mxu0 0
    %123 = vmatpush1.bf16.msra.mxu0 0
    %124 = vmatprep.subr.bf16.mxu0 0
    %125 = vmatpush1.bf16.msra.mxu0 0
    %126 = vmatprep.subr.bf16.mxu0 0
    %127 = vmatpush1.bf16.msra.mxu0 0
    %128 = vmatprep.subr.bf16.mxu0 0
    %129 = vmatpush1.bf16.msra.mxu0 0
    %130 = vmatprep.subr.bf16.mxu0 0
    %131 = vmatpush1.bf16.msra.mxu0 0
    %132 = vmatprep.subr.bf16.mxu0 0
    %133 = vmatpush1.bf16.msra.mxu0 0
    %134 = vmatprep.subr.bf16.mxu0 0
    %135 = vmatpush1.bf16.msra.mxu0 0
    %136 = vmatprep.subr.bf16.mxu0 0
    %137 = vmatpush1.bf16.msra.mxu0 0
    %138 = vmatprep.subr.bf16.mxu0 0
    %139 = vmatpush1.bf16.msra.mxu0 0
    %140 = vmatprep.mubr.bf16.mxu0 0
    %141 = vmatmul.mubr.bf16.gmra.mrb[0].mxu0 %v106
    %v142 = vpop.f32.mrb[0].mxu0
    %v143 = vadd.f32 %v85, %v142
    %v144 = vpop.f32.mrb[0].mxu0
    %v145 = vpop.f32.mrb[0].mxu0
    %v146 = vadd.f32 %v85, %v145
    %v147 = vpop.f32.mrb[0].mxu0
    %148 = vdwg.mxu0
    %v149 = vtanh.pop %v143
    %v150 = vtanh.pop %v146
    %s151 = scalar_lea.vmem [#allocation5], 16
    %v152 = vld [vmem:[%s151] sm:$0xf]
    %v153 = vld [vmem:[%s151 + $0x4] sm:$0xf]
    %v154 = vld [vmem:[%s151 + $0x8] sm:$0xf]
    %v155 = vld [vmem:[%s151 + $0xc] sm:$0xf]
    %s156 = scalar_lea.vmem %s2, 1
    %v157 = vld [vmem:[%s156] sm:$0x1]
    %v159 = vlaneseq
    %v160 = vshrl.u32 %v159, 7
    %v161 = vsub.s32 0, %v160
    %v162 = vrot.slane %v157, %v161
    %v168 = vunpack.c.l.b16 %v152
    %v169 = vunpack.c.l.b16 %v153
    %v170 = vunpack.c.l.b16 %v154
    %v171 = vunpack.c.l.b16 %v155
    %v172 = vpack.c.b16 %v169, %v168
    %v173 = vpack.c.b16 %v171, %v170
    %176 = vmatprep.subr.bf16.mxu0 0
    %177 = vmatpush1.bf16.msra.mxu0 %v172
    %178 = vmatprep.subr.bf16.mxu0 0
    %179 = vmatpush1.bf16.msra.mxu0 %v173
    %180 = vmatprep.subr.bf16.mxu0 0
    %181 = vmatpush1.bf16.msra.mxu0 0
    %182 = vmatprep.subr.bf16.mxu0 0
    %183 = vmatpush1.bf16.msra.mxu0 0
    %184 = vmatprep.subr.bf16.mxu0 0
    %185 = vmatpush1.bf16.msra.mxu0 0
    %186 = vmatprep.subr.bf16.mxu0 0
    %187 = vmatpush1.bf16.msra.mxu0 0
    %188 = vmatprep.subr.bf16.mxu0 0
    %189 = vmatpush1.bf16.msra.mxu0 0
    %190 = vmatprep.subr.bf16.mxu0 0
    %191 = vmatpush1.bf16.msra.mxu0 0
    %192 = vmatprep.subr.bf16.mxu0 0
    %193 = vmatpush1.bf16.msra.mxu0 0
    %194 = vmatprep.subr.bf16.mxu0 0
    %195 = vmatpush1.bf16.msra.mxu0 0
    %196 = vmatprep.subr.bf16.mxu0 0
    %197 = vmatpush1.bf16.msra.mxu0 0
    %198 = vmatprep.subr.bf16.mxu0 0
    %199 = vmatpush1.bf16.msra.mxu0 0
    %200 = vmatprep.subr.bf16.mxu0 0
    %201 = vmatpush1.bf16.msra.mxu0 0
    %202 = vmatprep.subr.bf16.mxu0 0
    %203 = vmatpush1.bf16.msra.mxu0 0
    %204 = vmatprep.subr.bf16.mxu0 0
    %205 = vmatpush1.bf16.msra.mxu0 0
    %206 = vmatprep.subr.bf16.mxu0 0
    %207 = vmatpush1.bf16.msra.mxu0 0
    %208 = vmatprep.mubr.bf16.mxu0 0
    %209 = vmatmul.mubr.bf16.gmra.mrb[0].mxu0 %v106
    %v210 = vpop.f32.mrb[0].mxu0
    %v211 = vadd.f32 %v162, %v210
    %v212 = vpop.f32.mrb[0].mxu0
    %v213 = vpop.f32.mrb[0].mxu0
    %v214 = vadd.f32 %v162, %v213
    %v215 = vpop.f32.mrb[0].mxu0
    %216 = vdwg.mxu0
    %v217 = vxor.u32 %v211, 2147483648
    %v218 = vxor.u32 %v214, 2147483648
    %v219 = vmul.f32 %v217, 1.442695
    %v220 = vpow.pop %v219
    %v221 = vmul.f32 %v218, 1.442695
    %v222 = vpow.pop %v221
    %v223 = vadd.f32 %v220, 1.0
    %v224 = vadd.f32 %v222, 1.0
    %v225 = vrcp.pop %v223
    %v226 = vmul.f32 1.0, %v225
    %v227 = vrcp.pop %v224
    %v228 = vmul.f32 1.0, %v227
    %s229 = scalar_lea.vmem [#allocation5], 32
    %v230 = vld [vmem:[%s229] sm:$0xf]
    %v231 = vld [vmem:[%s229 + $0x4] sm:$0xf]
    %v232 = vld [vmem:[%s229 + $0x8] sm:$0xf]
    %v233 = vld [vmem:[%s229 + $0xc] sm:$0xf]
    %s234 = scalar_lea.vmem %s2, 2
    %v235 = vld [vmem:[%s234] sm:$0x1]
    %v237 = vlaneseq
    %v238 = vshrl.u32 %v237, 7
    %v239 = vsub.s32 0, %v238
    %v240 = vrot.slane %v235, %v239
    %v246 = vunpack.c.l.b16 %v230
    %v247 = vunpack.c.l.b16 %v231
    %v248 = vunpack.c.l.b16 %v232
    %v249 = vunpack.c.l.b16 %v233
    %v250 = vpack.c.b16 %v247, %v246
    %v251 = vpack.c.b16 %v249, %v248
    %254 = vmatprep.subr.bf16.mxu0 0
    %255 = vmatpush1.bf16.msra.mxu0 %v250
    %256 = vmatprep.subr.bf16.mxu0 0
    %257 = vmatpush1.bf16.msra.mxu0 %v251
    %258 = vmatprep.subr.bf16.mxu0 0
    %259 = vmatpush1.bf16.msra.mxu0 0
    %260 = vmatprep.subr.bf16.mxu0 0
    %261 = vmatpush1.bf16.msra.mxu0 0
    %262 = vmatprep.subr.bf16.mxu0 0
    %263 = vmatpush1.bf16.msra.mxu0 0
    %264 = vmatprep.subr.bf16.mxu0 0
    %265 = vmatpush1.bf16.msra.mxu0 0
    %266 = vmatprep.subr.bf16.mxu0 0
    %267 = vmatpush1.bf16.msra.mxu0 0
    %268 = vmatprep.subr.bf16.mxu0 0
    %269 = vmatpush1.bf16.msra.mxu0 0
    %270 = vmatprep.subr.bf16.mxu0 0
    %271 = vmatpush1.bf16.msra.mxu0 0
    %272 = vmatprep.subr.bf16.mxu0 0
    %273 = vmatpush1.bf16.msra.mxu0 0
    %274 = vmatprep.subr.bf16.mxu0 0
    %275 = vmatpush1.bf16.msra.mxu0 0
    %276 = vmatprep.subr.bf16.mxu0 0
    %277 = vmatpush1.bf16.msra.mxu0 0
    %278 = vmatprep.subr.bf16.mxu0 0
    %279 = vmatpush1.bf16.msra.mxu0 0
    %280 = vmatprep.subr.bf16.mxu0 0
    %281 = vmatpush1.bf16.msra.mxu0 0
    %282 = vmatprep.subr.bf16.mxu0 0
    %283 = vmatpush1.bf16.msra.mxu0 0
    %284 = vmatprep.subr.bf16.mxu0 0
    %285 = vmatpush1.bf16.msra.mxu0 0
    %286 = vmatprep.mubr.bf16.mxu0 0
    %287 = vmatmul.mubr.bf16.gmra.mrb[0].mxu0 %v106
    %v288 = vpop.f32.mrb[0].mxu0
    %v289 = vadd.f32 %v240, %v288
    %v290 = vpop.f32.mrb[0].mxu0
    %v291 = vpop.f32.mrb[0].mxu0
    %v292 = vadd.f32 %v240, %v291
    %v293 = vpop.f32.mrb[0].mxu0
    %294 = vdwg.mxu0
    %v295 = vxor.u32 %v289, 2147483648
    %v296 = vxor.u32 %v292, 2147483648
    %v297 = vmul.f32 %v295, 1.442695
    %v298 = vpow.pop %v297
    %v299 = vmul.f32 %v296, 1.442695
    %v300 = vpow.pop %v299
    %v301 = vadd.f32 %v298, 1.0
    %v302 = vadd.f32 %v300, 1.0
    %v303 = vrcp.pop %v301
    %v304 = vmul.f32 1.0, %v303
    %v305 = vrcp.pop %v302
    %v306 = vmul.f32 1.0, %v305
    %v307 = vsub.f32 1.0, %v226
    %v308 = vsub.f32 1.0, %v228
    %v309 = vmul.f32 %v307, %v149
    %v310 = vmul.f32 %v308, %v150
    %v311 = vmul.f32 %v226, %v75
    %v312 = vadd.f32 %v311, %v309
    %v313 = vmul.f32 %v304, %v312
    %v315 = vrot.slane %v312, 6
    %v317 = vmul.f32 %v226, %v315
    %v318 = vadd.f32 %v317, %v309
    %v319 = vmul.f32 %v304, %v318
    %v321 = vrot.slane %v318, 6
    %v323 = vmul.f32 %v226, %v321
    %v324 = vadd.f32 %v323, %v309
    %v325 = vmul.f32 %v304, %v324
    %v327 = vrot.slane %v324, 6
    %v329 = vmul.f32 %v226, %v327
    %v330 = vadd.f32 %v329, %v309
    %v331 = vmul.f32 %v304, %v330
    %v333 = vrot.slane %v330, 6
    %v335 = vmul.f32 %v228, %v333
    %v336 = vadd.f32 %v335, %v310
    %v337 = vmul.f32 %v306, %v336
    %v339 = vrot.slane %v336, 6
    %v341 = vmul.f32 %v228, %v339
    %v342 = vadd.f32 %v341, %v310
    %v343 = vmul.f32 %v306, %v342
    %v345 = vrot.slane %v342, 6
    %v347 = vmul.f32 %v228, %v345
    %v348 = vadd.f32 %v347, %v310
    %v349 = vmul.f32 %v306, %v348
    %v351 = vrot.slane %v348, 6
    %v353 = vmul.f32 %v228, %v351
    %v354 = vadd.f32 %v353, %v310
    %v355 = vmul.f32 %v306, %v354
    %vm356 = vcmask 523270
    %357 = vst.msk [vmem:[#allocation9 - $0x6] sm:$0xc0] %vm356, %v354
    %vm358 = vcmask 1041408
    %v359 = vsel %vm358, %v313, %v319
    %vm360 = vcmask 1043456
    %v361 = vsel %vm360, %v359, %v325
    %vm362 = vcmask 1045504
    %v363 = vsel %vm362, %v361, %v331
    %v364 = vsel %vm358, %v337, %v343
    %v365 = vsel %vm360, %v364, %v349
    %v366 = vsel %vm362, %v365, %v355
    %v367 = vpack.c.bf16 %v366, %v363
    %v368 = vld [vmem:[%s6] sm:$0x3]
    %v369 = vld [vmem:[#allocation7] sm:$0xf]
    %v370 = vld [vmem:[#allocation7 + $0x4] sm:$0xf]
    %v371 = vld [vmem:[#allocation7 + $0x8] sm:$0xf]
    %v372 = vld [vmem:[#allocation7 + $0xc] sm:$0xf]
    %v373 = vld [vmem:[#allocation7 + $0x10] sm:$0xf]
    %v374 = vld [vmem:[#allocation7 + $0x14] sm:$0xf]
    %v375 = vld [vmem:[#allocation7 + $0x18] sm:$0xf]
    %v376 = vld [vmem:[#allocation7 + $0x1c] sm:$0xf]
    %v377 = vld [vmem:[%s5] sm:$0x1]
    %v379 = vlaneseq
    %v380 = vshrl.u32 %v379, 7
    %v381 = vsub.s32 0, %v380
    %v382 = vrot.slane %v377, %v381
    %v392 = vunpack.c.l.b16 %v369
    %v393 = vunpack.c.l.b16 %v370
    %v394 = vunpack.c.l.b16 %v371
    %v395 = vunpack.c.l.b16 %v372
    %v396 = vunpack.c.l.b16 %v373
    %v397 = vunpack.c.l.b16 %v374
    %v398 = vunpack.c.l.b16 %v375
    %v399 = vunpack.c.l.b16 %v376
    %v400 = vpack.c.b16 %v393, %v392
    %v401 = vpack.c.b16 %v395, %v394
    %v402 = vpack.c.b16 %v397, %v396
    %v403 = vpack.c.b16 %v399, %v398
    %vm408 = vcmask 523264
    %v410 = vsel %vm408, %v367, 0
    %412 = vmatprep.subr.bf16.mxu0 0
    %413 = vmatpush1.bf16.msra.mxu0 %v400
    %414 = vmatprep.subr.bf16.mxu0 0
    %415 = vmatpush1.bf16.msra.mxu0 %v401
    %416 = vmatprep.subr.bf16.mxu0 0
    %417 = vmatpush1.bf16.msra.mxu0 %v402
    %418 = vmatprep.subr.bf16.mxu0 0
    %419 = vmatpush1.bf16.msra.mxu0 %v403
    %420 = vmatprep.subr.bf16.mxu0 0
    %421 = vmatpush1.bf16.msra.mxu0 0
    %422 = vmatprep.subr.bf16.mxu0 0
    %423 = vmatpush1.bf16.msra.mxu0 0
    %424 = vmatprep.subr.bf16.mxu0 0
    %425 = vmatpush1.bf16.msra.mxu0 0
    %426 = vmatprep.subr.bf16.mxu0 0
    %427 = vmatpush1.bf16.msra.mxu0 0
    %428 = vmatprep.subr.bf16.mxu0 0
    %429 = vmatpush1.bf16.msra.mxu0 0
    %430 = vmatprep.subr.bf16.mxu0 0
    %431 = vmatpush1.bf16.msra.mxu0 0
    %432 = vmatprep.subr.bf16.mxu0 0
    %433 = vmatpush1.bf16.msra.mxu0 0
    %434 = vmatprep.subr.bf16.mxu0 0
    %435 = vmatpush1.bf16.msra.mxu0 0
    %436 = vmatprep.subr.bf16.mxu0 0
    %437 = vmatpush1.bf16.msra.mxu0 0
    %438 = vmatprep.subr.bf16.mxu0 0
    %439 = vmatpush1.bf16.msra.mxu0 0
    %440 = vmatprep.subr.bf16.mxu0 0
    %441 = vmatpush1.bf16.msra.mxu0 0
    %442 = vmatprep.subr.bf16.mxu0 0
    %443 = vmatpush1.bf16.msra.mxu0 0
    %444 = vmatprep.mubr.bf16.mxu0 0
    %445 = vmatmul.mubr.bf16.gmra.mrb[0].mxu0 %v410
    %v446 = vpop.f32.mrb[0].mxu0
    %v447 = vadd.f32 %v382, %v446
    %v448 = vpop.f32.mrb[0].mxu0
    %v449 = vpop.f32.mrb[0].mxu0
    %v450 = vadd.f32 %v382, %v449
    %v451 = vpop.f32.mrb[0].mxu0
    %452 = vdwg.mxu0
    %v453 = vtanh.pop %v447
    %v454 = vtanh.pop %v450
    %s455 = scalar_lea.vmem [#allocation7], 32
    %v456 = vld [vmem:[%s455] sm:$0xf]
    %v457 = vld [vmem:[%s455 + $0x4] sm:$0xf]
    %v458 = vld [vmem:[%s455 + $0x8] sm:$0xf]
    %v459 = vld [vmem:[%s455 + $0xc] sm:$0xf]
    %v460 = vld [vmem:[%s455 + $0x10] sm:$0xf]
    %v461 = vld [vmem:[%s455 + $0x14] sm:$0xf]
    %v462 = vld [vmem:[%s455 + $0x18] sm:$0xf]
    %v463 = vld [vmem:[%s455 + $0x1c] sm:$0xf]
    %s464 = scalar_lea.vmem %s5, 1
    %v465 = vld [vmem:[%s464] sm:$0x1]
    %v467 = vlaneseq
    %v468 = vshrl.u32 %v467, 7
    %v469 = vsub.s32 0, %v468
    %v470 = vrot.slane %v465, %v469
    %v480 = vunpack.c.l.b16 %v456
    %v481 = vunpack.c.l.b16 %v457
    %v482 = vunpack.c.l.b16 %v458
    %v483 = vunpack.c.l.b16 %v459
    %v484 = vunpack.c.l.b16 %v460
    %v485 = vunpack.c.l.b16 %v461
    %v486 = vunpack.c.l.b16 %v462
    %v487 = vunpack.c.l.b16 %v463
    %v488 = vpack.c.b16 %v481, %v480
    %v489 = vpack.c.b16 %v483, %v482
    %v490 = vpack.c.b16 %v485, %v484
    %v491 = vpack.c.b16 %v487, %v486
    %496 = vmatprep.subr.bf16.mxu0 0
    %497 = vmatpush1.bf16.msra.mxu0 %v488
    %498 = vmatprep.subr.bf16.mxu0 0
    %499 = vmatpush1.bf16.msra.mxu0 %v489
    %500 = vmatprep.subr.bf16.mxu0 0
    %501 = vmatpush1.bf16.msra.mxu0 %v490
    %502 = vmatprep.subr.bf16.mxu0 0
    %503 = vmatpush1.bf16.msra.mxu0 %v491
    %504 = vmatprep.subr.bf16.mxu0 0
    %505 = vmatpush1.bf16.msra.mxu0 0
    %506 = vmatprep.subr.bf16.mxu0 0
    %507 = vmatpush1.bf16.msra.mxu0 0
    %508 = vmatprep.subr.bf16.mxu0 0
    %509 = vmatpush1.bf16.msra.mxu0 0
    %510 = vmatprep.subr.bf16.mxu0 0
    %511 = vmatpush1.bf16.msra.mxu0 0
    %512 = vmatprep.subr.bf16.mxu0 0
    %513 = vmatpush1.bf16.msra.mxu0 0
    %514 = vmatprep.subr.bf16.mxu0 0
    %515 = vmatpush1.bf16.msra.mxu0 0
    %516 = vmatprep.subr.bf16.mxu0 0
    %517 = vmatpush1.bf16.msra.mxu0 0
    %518 = vmatprep.subr.bf16.mxu0 0
    %519 = vmatpush1.bf16.msra.mxu0 0
    %520 = vmatprep.subr.bf16.mxu0 0
    %521 = vmatpush1.bf16.msra.mxu0 0
    %522 = vmatprep.subr.bf16.mxu0 0
    %523 = vmatpush1.bf16.msra.mxu0 0
    %524 = vmatprep.subr.bf16.mxu0 0
    %525 = vmatpush1.bf16.msra.mxu0 0
    %526 = vmatprep.subr.bf16.mxu0 0
    %527 = vmatpush1.bf16.msra.mxu0 0
    %528 = vmatprep.mubr.bf16.mxu0 0
    %529 = vmatmul.mubr.bf16.gmra.mrb[0].mxu0 %v410
    %v530 = vpop.f32.mrb[0].mxu0
    %v531 = vadd.f32 %v470, %v530
    %v532 = vpop.f32.mrb[0].mxu0
    %v533 = vpop.f32.mrb[0].mxu0
    %v534 = vadd.f32 %v470, %v533
    %v535 = vpop.f32.mrb[0].mxu0
    %536 = vdwg.mxu0
    %v537 = vxor.u32 %v531, 2147483648
    %v538 = vxor.u32 %v534, 2147483648
    %v539 = vmul.f32 %v537, 1.442695
    %v540 = vpow.pop %v539
    %v541 = vmul.f32 %v538, 1.442695
    %v542 = vpow.pop %v541
    %v543 = vadd.f32 %v540, 1.0
    %v544 = vadd.f32 %v542, 1.0
    %v545 = vrcp.pop %v543
    %v546 = vmul.f32 1.0, %v545
    %v547 = vrcp.pop %v544
    %v548 = vmul.f32 1.0, %v547
    %s549 = scalar_lea.vmem [#allocation7], 64
    %v550 = vld [vmem:[%s549] sm:$0xf]
    %v551 = vld [vmem:[%s549 + $0x4] sm:$0xf]
    %v552 = vld [vmem:[%s549 + $0x8] sm:$0xf]
    %v553 = vld [vmem:[%s549 + $0xc] sm:$0xf]
    %v554 = vld [vmem:[%s549 + $0x10] sm:$0xf]
    %v555 = vld [vmem:[%s549 + $0x14] sm:$0xf]
    %v556 = vld [vmem:[%s549 + $0x18] sm:$0xf]
    %v557 = vld [vmem:[%s549 + $0x1c] sm:$0xf]
    %s558 = scalar_lea.vmem %s5, 2
    %v559 = vld [vmem:[%s558] sm:$0x1]
    %v561 = vlaneseq
    %v562 = vshrl.u32 %v561, 7
    %v563 = vsub.s32 0, %v562
    %v564 = vrot.slane %v559, %v563
    %v574 = vunpack.c.l.b16 %v550
    %v575 = vunpack.c.l.b16 %v551
    %v576 = vunpack.c.l.b16 %v552
    %v577 = vunpack.c.l.b16 %v553
    %v578 = vunpack.c.l.b16 %v554
    %v579 = vunpack.c.l.b16 %v555
    %v580 = vunpack.c.l.b16 %v556
    %v581 = vunpack.c.l.b16 %v557
    %v582 = vpack.c.b16 %v575, %v574
    %v583 = vpack.c.b16 %v577, %v576
    %v584 = vpack.c.b16 %v579, %v578
    %v585 = vpack.c.b16 %v581, %v580
    %590 = vmatprep.subr.bf16.mxu0 0
    %591 = vmatpush1.bf16.msra.mxu0 %v582
    %592 = vmatprep.subr.bf16.mxu0 0
    %593 = vmatpush1.bf16.msra.mxu0 %v583
    %594 = vmatprep.subr.bf16.mxu0 0
    %595 = vmatpush1.bf16.msra.mxu0 %v584
    %596 = vmatprep.subr.bf16.mxu0 0
    %597 = vmatpush1.bf16.msra.mxu0 %v585
    %598 = vmatprep.subr.bf16.mxu0 0
    %599 = vmatpush1.bf16.msra.mxu0 0
    %600 = vmatprep.subr.bf16.mxu0 0
    %601 = vmatpush1.bf16.msra.mxu0 0
    %602 = vmatprep.subr.bf16.mxu0 0
    %603 = vmatpush1.bf16.msra.mxu0 0
    %604 = vmatprep.subr.bf16.mxu0 0
    %605 = vmatpush1.bf16.msra.mxu0 0
    %606 = vmatprep.subr.bf16.mxu0 0
    %607 = vmatpush1.bf16.msra.mxu0 0
    %608 = vmatprep.subr.bf16.mxu0 0
    %609 = vmatpush1.bf16.msra.mxu0 0
    %610 = vmatprep.subr.bf16.mxu0 0
    %611 = vmatpush1.bf16.msra.mxu0 0
    %612 = vmatprep.subr.bf16.mxu0 0
    %613 = vmatpush1.bf16.msra.mxu0 0
    %614 = vmatprep.subr.bf16.mxu0 0
    %615 = vmatpush1.bf16.msra.mxu0 0
    %616 = vmatprep.subr.bf16.mxu0 0
    %617 = vmatpush1.bf16.msra.mxu0 0
    %618 = vmatprep.subr.bf16.mxu0 0
    %619 = vmatpush1.bf16.msra.mxu0 0
    %620 = vmatprep.subr.bf16.mxu0 0
    %621 = vmatpush1.bf16.msra.mxu0 0
    %622 = vmatprep.mubr.bf16.mxu0 0
    %623 = vmatmul.mubr.bf16.gmra.mrb[0].mxu0 %v410
    %v624 = vpop.f32.mrb[0].mxu0
    %v625 = vadd.f32 %v564, %v624
    %v626 = vpop.f32.mrb[0].mxu0
    %v627 = vpop.f32.mrb[0].mxu0
    %v628 = vadd.f32 %v564, %v627
    %v629 = vpop.f32.mrb[0].mxu0
    %630 = vdwg.mxu0
    %v631 = vxor.u32 %v625, 2147483648
    %v632 = vxor.u32 %v628, 2147483648
    %v633 = vmul.f32 %v631, 1.442695
    %v634 = vpow.pop %v633
    %v635 = vmul.f32 %v632, 1.442695
    %v636 = vpow.pop %v635
    %v637 = vadd.f32 %v634, 1.0
    %v638 = vadd.f32 %v636, 1.0
    %v639 = vrcp.pop %v637
    %v640 = vmul.f32 1.0, %v639
    %v641 = vrcp.pop %v638
    %v642 = vmul.f32 1.0, %v641
    %v643 = vsub.f32 1.0, %v546
    %v644 = vsub.f32 1.0, %v548
    %v645 = vmul.f32 %v643, %v453
    %v646 = vmul.f32 %v644, %v454
    %v647 = vmul.f32 %v546, %v368
    %v648 = vadd.f32 %v647, %v645
    %v649 = vmul.f32 %v640, %v648
    %v651 = vrot.slane %v648, 6
    %v653 = vmul.f32 %v546, %v651
    %v654 = vadd.f32 %v653, %v645
    %v655 = vmul.f32 %v640, %v654
    %v657 = vrot.slane %v654, 6
    %v659 = vmul.f32 %v546, %v657
    %v660 = vadd.f32 %v659, %v645
    %v661 = vmul.f32 %v640, %v660
    %v663 = vrot.slane %v660, 6
    %v665 = vmul.f32 %v546, %v663
    %v666 = vadd.f32 %v665, %v645
    %v667 = vmul.f32 %v640, %v666
    %v669 = vrot.slane %v666, 6
    %v671 = vmul.f32 %v548, %v669
    %v672 = vadd.f32 %v671, %v646
    %v673 = vmul.f32 %v642, %v672
    %v675 = vrot.slane %v672, 6
    %v677 = vmul.f32 %v548, %v675
    %v678 = vadd.f32 %v677, %v646
    %v679 = vmul.f32 %v642, %v678
    %v681 = vrot.slane %v678, 6
    %v683 = vmul.f32 %v548, %v681
    %v684 = vadd.f32 %v683, %v646
    %v685 = vmul.f32 %v642, %v684
    %v687 = vrot.slane %v684, 6
    %v689 = vmul.f32 %v548, %v687
    %v690 = vadd.f32 %v689, %v646
    %v691 = vmul.f32 %v642, %v690
    %692 = vst.msk [vmem:[#allocation11 - $0x6] sm:$0xc0] %vm356, %v690
    %v694 = vrot.slane %v649, 1
    %695 = vrot.lane.b32.xlu0 %v694, 64
    %v696 = vpop.permute.xlu0 %695
    %v698 = vsel %vm408, %v649, %v696
    %v700 = vrot.slane %v655, 1
    %701 = vrot.lane.b32.xlu0 %v700, 64
    %v702 = vpop.permute.xlu0 %701
    %v704 = vsel %vm408, %v655, %v702
    %v706 = vrot.slane %v661, 1
    %707 = vrot.lane.b32.xlu0 %v706, 64
    %v708 = vpop.permute.xlu0 %707
    %v710 = vsel %vm408, %v661, %v708
    %v712 = vrot.slane %v667, 1
    %713 = vrot.lane.b32.xlu0 %v712, 64
    %v714 = vpop.permute.xlu0 %713
    %v716 = vsel %vm408, %v667, %v714
    %v718 = vrot.slane %v673, 1
    %719 = vrot.lane.b32.xlu0 %v718, 64
    %v720 = vpop.permute.xlu0 %719
    %v722 = vsel %vm408, %v673, %v720
    %v724 = vrot.slane %v679, 1
    %725 = vrot.lane.b32.xlu0 %v724, 64
    %v726 = vpop.permute.xlu0 %725
    %v728 = vsel %vm408, %v679, %v726
    %v730 = vrot.slane %v685, 1
    %731 = vrot.lane.b32.xlu0 %v730, 64
    %v732 = vpop.permute.xlu0 %731
    %v734 = vsel %vm408, %v685, %v732
    %v736 = vrot.slane %v691, 1
    %737 = vrot.lane.b32.xlu0 %v736, 64
    %v738 = vpop.permute.xlu0 %737
    %v740 = vsel %vm408, %v691, %v738
    %v742 = vrot.slane %v704, 1
    %v745 = vrot.slane %v710, 2
    %v748 = vrot.slane %v716, 3
    %v751 = vrot.slane %v722, 4
    %v754 = vrot.slane %v728, 5
    %v757 = vrot.slane %v734, 6
    %v760 = vrot.slane %v740, 7
    %vm762 = vcmask 1040384
    %v763 = vsel %vm762, %v698, %v742
    %v764 = vsel %vm358, %v763, %v745
    %vm765 = vcmask 1042432
    %v766 = vsel %vm765, %v764, %v748
    %v767 = vsel %vm360, %v766, %v751
    %vm768 = vcmask 1044480
    %v769 = vsel %vm768, %v767, %v754
    %v770 = vsel %vm362, %v769, %v757
    %vm771 = vcmask 1046528
    %v772 = vsel %vm771, %v770, %v760
    %773 = vst [vmem:[#allocation8] sm:$0xff] %v772
    // Predicated region
    $region42: #{tpu_custom_call.1} parent=1 // pred_check
      _
    $region43: #{tpu_custom_call.1} parent=1 // pred_check_branch
      %775 = sbr.rel (0) target = $region45
    $region44: #{tpu_custom_call.1} parent=1 // pred_region
      %s777 = ssub.s32 128, 128
      %778 = vsyncadd [#allocation4], %s777
      %s780 = sshll.u32 [#allocation8], 4
      %s781 = int_to_ptr.vmem [resolvable:$true] %s780
      %783 = dma.vmem_to_hbm [thread:$0]  %s781, 128, %s7, [#allocation4]
    $region45: #{tpu_custom_call.1} parent=1 // pred_fallthru
      _
    // Predicated region
    $region46: #{tpu_custom_call.1} parent=1 // pred_check
      _
    $region47: #{tpu_custom_call.1} parent=1 // pred_check_branch
      %785 = sbr.rel (0) target = $region49
    $region48: #{tpu_custom_call.1} parent=1 // pred_region
      %s787 = ssub.s32 32, 32
      %788 = vsyncadd [#allocation10], %s787
      %s790 = sshll.u32 [#allocation9], 4
      %s791 = int_to_ptr.vmem [resolvable:$true] %s790
      %793 = dma.vmem_to_hbm [thread:$0]  %s791, 32, %s8, [#allocation10]
    $region49: #{tpu_custom_call.1} parent=1 // pred_fallthru
      _
    // Predicated region
    $region50: #{tpu_custom_call.1} parent=1 // pred_check
      _
    $region51: #{tpu_custom_call.1} parent=1 // pred_check_branch
      %795 = sbr.rel (0) target = $region53
    $region52: #{tpu_custom_call.1} parent=1 // pred_region
      %s797 = ssub.s32 32, 32
      %798 = vsyncadd [#allocation10], %s797
      %s800 = sshll.u32 [#allocation11], 4
      %s801 = int_to_ptr.vmem [resolvable:$true] %s800
      %803 = dma.vmem_to_hbm [thread:$0]  %s801, 32, %s9, [#allocation10]
    $region53: #{tpu_custom_call.1} parent=1 // pred_fallthru
      _
    // Predicated region
    $region54: #{tpu_custom_call.1} parent=1 // pred_check
      _
    $region55: #{tpu_custom_call.1} parent=1 // pred_check_branch
      %805 = sbr.rel (0) target = $region57
    $region56: #{tpu_custom_call.1} parent=1 // pred_region
      %806 = dma.done [#allocation4], 128
    $region57: #{tpu_custom_call.1} parent=1 // pred_fallthru
      _
    // Predicated region
    $region58: #{tpu_custom_call.1} parent=1 // pred_check
      _
    $region59: #{tpu_custom_call.1} parent=1 // pred_check_branch
      %808 = sbr.rel (0) target = $region61
    $region60: #{tpu_custom_call.1} parent=1 // pred_region
      %809 = dma.done [#allocation10], 32
    $region61: #{tpu_custom_call.1} parent=1 // pred_fallthru
      _
    // Predicated region
    $region62: #{tpu_custom_call.1} parent=1 // pred_check
      _
    $region63: #{tpu_custom_call.1} parent=1 // pred_check_branch
      %811 = sbr.rel (0) target = $region65
    $region64: #{tpu_custom_call.1} parent=1 // pred_region
      %812 = dma.done [#allocation10], 32
    $region65: #{tpu_custom_call.1} parent=1 // pred_fallthru
      _
    %813 = vsyncpa [#allocation3], 1
    %814 = vsyncpa [#allocation6], 1
    %815 = vsyncpa [#allocation4], 1
    %816 = vsyncpa [#allocation10], 1

</llo_original>
